<compile_context>
chip_gen: v5e
topology: v5e:2x2
jax: 0.10.0
libtpu: 0.0.40
codegen_flags: <defaults>
</compile_context>

<pallas_src>
import jax
import jax.numpy as jnp
from jax.experimental import pallas as pl
from jax.experimental.pallas import tpu as pltpu


BATCH_TILE_CAP = 2048  # rows per grid step; ~2-3 MiB VMEM, safe on v5e/v6e/v7x


def round_up(n, m):
    return ((n + m - 1) // m) * m


def subnet_kernel(x_ref, w1_ref, b1_ref, w2_ref, b2_ref, w3_ref, b3_ref, o_ref):
    # hidden layer 1: Linear + tanh (MXU matmul, f32 accumulate; tanh -> EUP)
    h = jnp.tanh(
        jnp.dot(x_ref[...], w1_ref[...], preferred_element_type=jnp.float32)
        + b1_ref[...]
    )
    # hidden layer 2: Linear + tanh
    h = jnp.tanh(
        jnp.dot(h, w2_ref[...], preferred_element_type=jnp.float32)
        + b2_ref[...]
    )
    # output layer (N=1): VPU multiply + lane reduction instead of an MXU pass
    # with a single useful column.  w3 is a (1, H2) row, b3 is (1, 1).
    z = jnp.sum(h * w3_ref[...], axis=-1, keepdims=True) + b3_ref[...]
    # Compact (tm, 1) store: masked vst, but minimal HBM writeback.
    o_ref[...] = jax.nn.sigmoid(z)


def _pick_tm(B):
    """Choose rows-per-grid-step.

    Small batches -> one step (launch overhead dominates anyway).
    Large batches -> at least two steps (v7x dual-TensorCore sharding of the
    'parallel' axis), capped at BATCH_TILE_CAP rows per step.
    """
    B8 = round_up(B, 8)
    if B8 <= 512:
        return B8
    return min(round_up(pl.cdiv(B, 2), 8), BATCH_TILE_CAP)


def subnet_forward(x, params, *, tm=None):
    """x: (B, D) float32.  params: padded kernel params from pad_params()."""
    B, D = x.shape
    w1, b1 = params["w1"], params["b1"]   # (D, H1), (1, H1)
    w2, b2 = params["w2"], params["b2"]   # (H1, H2), (1, H2)
    w3, b3 = params["w3"], params["b3"]   # (1, H2), (1, 1)
    H1, H2 = w1.shape[1], w2.shape[1]

    if tm is None:
        tm = _pick_tm(B)
    tm = round_up(min(tm, round_up(B, 8)), 8)
    grid = (pl.cdiv(B, tm),)  # ragged last tile handled by Pallas block padding

    # Parameter blocks are whole-array with a constant index_map; they stay
    # resident in VMEM across grid steps.
    full = lambda shape: pl.BlockSpec(shape, lambda i: (0, 0))

    out = pl.pallas_call(
        subnet_kernel,
        out_shape=jax.ShapeDtypeStruct((B, 1), jnp.float32),
        grid_spec=pltpu.PrefetchScalarGridSpec(
            num_scalar_prefetch=0,
            grid=grid,
            in_specs=[
                pl.BlockSpec((tm, D), lambda i: (i, 0)),  # x tile over batch
                full((D, H1)), full((1, H1)),             # layer 1 params
                full((H1, H2)), full((1, H2)),            # layer 2 params
                full((1, H2)), full((1, 1)),              # layer 3 (row vec + scalar bias)
            ],
            out_specs=pl.BlockSpec((tm, 1), lambda i: (i, 0)),
        ),
        compiler_params=pltpu.CompilerParams(dimension_semantics=("parallel",)),
    )(x, w1, b1, w2, b2, w3, b3)
    return out


def init_params(key, input_size, layers_dims=(50, 30)):
    """Deterministic init matching the shapes of SubNet.__init__
    (weights stored pre-transposed as (in, out))."""
    dims = [input_size] + list(layers_dims) + [1]
    params = {}
    for idx in range(1, len(dims)):
        key, kw, kb = jax.random.split(key, 3)
        fan_in, fan_out = dims[idx - 1], dims[idx]
        bound = 1.0 / jnp.sqrt(fan_in)
        params[f"w{idx}"] = jax.random.uniform(
            kw, (fan_in, fan_out), jnp.float32, -bound, bound)
        params[f"b{idx}"] = jax.random.uniform(
            kb, (1, fan_out), jnp.float32, -bound, bound)
    # kernel_weights exists in the module but is unused in forward()
    key, kk = jax.random.split(key)
    params["kernel_weights"] = jax.random.normal(kk, (1, input_size), jnp.float32)
    return params


def pad_params(params, pad=128):
    """Zero-pad hidden dims to a multiple of `pad` lanes and reshape the final
    (H2, 1) weight into a (1, H2_pad) row for the in-kernel multiply+reduce.
    Zero padding is exact: padded hidden units evaluate to tanh(0) = 0 and the
    zero rows/columns of downstream weights keep them out of the result."""
    w1, b1 = params["w1"], params["b1"]
    w2, b2 = params["w2"], params["b2"]
    w3, b3 = params["w3"], params["b3"]
    h1, h2 = w1.shape[1], w2.shape[1]
    H1, H2 = round_up(h1, pad), round_up(h2, pad)
    return {
        "w1": jnp.pad(w1, ((0, 0), (0, H1 - h1))),
        "b1": jnp.pad(b1, ((0, 0), (0, H1 - h1))),
        "w2": jnp.pad(w2, ((0, H1 - h1), (0, H2 - h2))),
        "b2": jnp.pad(b2, ((0, 0), (0, H2 - h2))),
        "w3": jnp.pad(w3.T, ((0, 0), (0, H2 - h2))),  # (1, H2_pad) row
        "b3": b3,                                     # (1, 1)
    }


def subnet_reference(x, params):
    h = jnp.tanh(x @ params["w1"] + params["b1"])
    h = jnp.tanh(h @ params["w2"] + params["b2"])
    return jax.nn.sigmoid(h @ params["w3"] + params["b3"])


if __name__ == "__main__":
    key = jax.random.PRNGKey(0)
    input_size = 32
    batch = 16

    kp, kx, kx2 = jax.random.split(key, 3)
    logical_params = init_params(kp, input_size, layers_dims=(50, 30))
    kernel_params = pad_params(logical_params, pad=128)

    # Case 1: tiny batch, single grid step.
    x = jax.random.normal(kx, (batch, input_size), jnp.float32)
    out = jax.block_until_ready(subnet_forward(x, kernel_params))
    ref = subnet_reference(x, logical_params)
    assert out.shape == (batch, 1)
    assert jnp.allclose(out, ref, atol=1e-5, rtol=1e-5), "mismatch vs reference (B=16)"

    # Case 2: ragged multi-step grid (exercises Pallas block padding on the
    # last tile and the masked compact output store).
    x2 = jax.random.normal(kx2, (200, input_size), jnp.float32)
    out2 = jax.block_until_ready(subnet_forward(x2, kernel_params, tm=64))
    ref2 = subnet_reference(x2, logical_params)
    assert out2.shape == (200, 1)
    assert jnp.allclose(out2, ref2, atol=1e-5, rtol=1e-5), "mismatch vs reference (B=200)"

    print("KERNEL_OK")
</pallas_src>

<mosaic_0001>
module attributes {stable_mosaic.version = 11 : i64} {
  func.func @subnet_kernel(%arg0: i32, %arg1: memref<16x32xf32, #tpu.memory_space<vmem>>, %arg2: memref<32x128xf32, #tpu.memory_space<vmem>>, %arg3: memref<1x128xf32, #tpu.memory_space<vmem>>, %arg4: memref<128x128xf32, #tpu.memory_space<vmem>>, %arg5: memref<1x128xf32, #tpu.memory_space<vmem>>, %arg6: memref<1x128xf32, #tpu.memory_space<vmem>>, %arg7: memref<1x1xf32, #tpu.memory_space<vmem>>, %arg8: memref<16x1xf32, #tpu.memory_space<vmem>>) attributes {dimension_semantics = [#tpu.dimension_semantics<parallel>], iteration_bounds = array<i64: 1>, scalar_prefetch = 0 : i64, scratch_operands = 0 : i64, tpu.core_type = #tpu.core_type<tc>, window_params = [{transform_indices = @transform_0, window_bounds = array<i64: 16, 32>}, {pipeline_mode = #tpu.pipeline_mode<synchronous>, transform_indices = @transform_1, window_bounds = array<i64: 32, 128>}, {pipeline_mode = #tpu.pipeline_mode<synchronous>, transform_indices = @transform_2, window_bounds = array<i64: 1, 128>}, {pipeline_mode = #tpu.pipeline_mode<synchronous>, transform_indices = @transform_3, window_bounds = array<i64: 128, 128>}, {pipeline_mode = #tpu.pipeline_mode<synchronous>, transform_indices = @transform_4, window_bounds = array<i64: 1, 128>}, {pipeline_mode = #tpu.pipeline_mode<synchronous>, transform_indices = @transform_5, window_bounds = array<i64: 1, 128>}, {pipeline_mode = #tpu.pipeline_mode<synchronous>, transform_indices = @transform_6, window_bounds = array<i64: 1, 1>}, {transform_indices = @transform_7, window_bounds = array<i64: 16, 1>}]} {
    %c0 = arith.constant 0 : index
    %c0_0 = arith.constant 0 : index
    %0 = vector.load %arg1[%c0, %c0_0] : memref<16x32xf32, #tpu.memory_space<vmem>>, vector<16x32xf32>
    %c0_1 = arith.constant 0 : index
    %c0_2 = arith.constant 0 : index
    %1 = vector.load %arg2[%c0_1, %c0_2] : memref<32x128xf32, #tpu.memory_space<vmem>>, vector<32x128xf32>
    %cst = arith.constant dense<0.000000e+00> : vector<16x128xf32>
    %2 = tpu.matmul %0, %1, %cst {dimension_numbers = #tpu.dot_dimension_numbers<[1], [0], [0], [1], [0, 0, 1, 1], [], []>} : vector<16x32xf32>, vector<32x128xf32>, vector<16x128xf32> -> vector<16x128xf32>
    %c0_3 = arith.constant 0 : index
    %c0_4 = arith.constant 0 : index
    %3 = vector.load %arg3[%c0_3, %c0_4] : memref<1x128xf32, #tpu.memory_space<vmem>>, vector<1x128xf32>
    %4 = vector.broadcast %3 : vector<1x128xf32> to vector<16x128xf32>
    %5 = arith.addf %2, %4 : vector<16x128xf32>
    %6 = math.tanh %5 : vector<16x128xf32>
    %c0_5 = arith.constant 0 : index
    %c0_6 = arith.constant 0 : index
    %7 = vector.load %arg4[%c0_5, %c0_6] : memref<128x128xf32, #tpu.memory_space<vmem>>, vector<128x128xf32>
    %cst_7 = arith.constant dense<0.000000e+00> : vector<16x128xf32>
    %8 = tpu.matmul %6, %7, %cst_7 {dimension_numbers = #tpu.dot_dimension_numbers<[1], [0], [0], [1], [0, 0, 1, 1], [], []>} : vector<16x128xf32>, vector<128x128xf32>, vector<16x128xf32> -> vector<16x128xf32>
    %c0_8 = arith.constant 0 : index
    %c0_9 = arith.constant 0 : index
    %9 = vector.load %arg5[%c0_8, %c0_9] : memref<1x128xf32, #tpu.memory_space<vmem>>, vector<1x128xf32>
    %10 = vector.broadcast %9 : vector<1x128xf32> to vector<16x128xf32>
    %11 = arith.addf %8, %10 : vector<16x128xf32>
    %12 = math.tanh %11 : vector<16x128xf32>
    %c0_10 = arith.constant 0 : index
    %c0_11 = arith.constant 0 : index
    %13 = vector.load %arg6[%c0_10, %c0_11] : memref<1x128xf32, #tpu.memory_space<vmem>>, vector<1x128xf32>
    %14 = vector.broadcast %13 : vector<1x128xf32> to vector<16x128xf32>
    %15 = arith.mulf %12, %14 : vector<16x128xf32>
    %cst_12 = arith.constant dense<0.000000e+00> : vector<16xf32>
    %16 = vector.multi_reduction <add>, %15, %cst_12 [1] : vector<16x128xf32> to vector<16xf32>
    %17 = vector.shape_cast %16 : vector<16xf32> to vector<16x1xf32>
    %c0_13 = arith.constant 0 : index
    %c0_14 = arith.constant 0 : index
    %18 = vector.load %arg7[%c0_13, %c0_14] : memref<1x1xf32, #tpu.memory_space<vmem>>, vector<1x1xf32>
    %19 = vector.broadcast %18 : vector<1x1xf32> to vector<16x1xf32>
    %20 = arith.addf %17, %19 : vector<16x1xf32>
    %21 = arith.negf %20 : vector<16x1xf32>
    %22 = math.exp %21 : vector<16x1xf32>
    %cst_15 = arith.constant 1.000000e+00 : f32
    %23 = vector.broadcast %cst_15 : f32 to vector<16x1xf32>
    %24 = arith.addf %23, %22 : vector<16x1xf32>
    %25 = arith.divf %23, %24 : vector<16x1xf32>
    %c0_16 = arith.constant 0 : index
    %c0_17 = arith.constant 0 : index
    %26 = vector.load %arg8[%c0_16, %c0_17] : memref<16x1xf32, #tpu.memory_space<vmem>>, vector<16x1xf32>
    tpu.vector_store %arg8[%c0_16, %c0_17], %25 {strides = array<i32>} : memref<16x1xf32, #tpu.memory_space<vmem>>, vector<16x1xf32>,
    return
  }
  func.func @transform_0(%arg0: i32) -> (i32, i32) {
    %c0_i32 = arith.constant 0 : i32
    %c0_i32_0 = arith.constant 0 : i32
    return %arg0, %c0_i32 : i32, i32
  }
  func.func @transform_1(%arg0: i32) -> (i32, i32) {
    %c0_i32 = arith.constant 0 : i32
    %c0_i32_0 = arith.constant 0 : i32
    %c0_i32_1 = arith.constant 0 : i32
    return %c0_i32, %c0_i32_0 : i32, i32
  }
  func.func @transform_2(%arg0: i32) -> (i32, i32) {
    %c0_i32 = arith.constant 0 : i32
    %c0_i32_0 = arith.constant 0 : i32
    %c0_i32_1 = arith.constant 0 : i32
    return %c0_i32, %c0_i32_0 : i32, i32
  }
  func.func @transform_3(%arg0: i32) -> (i32, i32) {
    %c0_i32 = arith.constant 0 : i32
    %c0_i32_0 = arith.constant 0 : i32
    %c0_i32_1 = arith.constant 0 : i32
    return %c0_i32, %c0_i32_0 : i32, i32
  }
  func.func @transform_4(%arg0: i32) -> (i32, i32) {
    %c0_i32 = arith.constant 0 : i32
    %c0_i32_0 = arith.constant 0 : i32
    %c0_i32_1 = arith.constant 0 : i32
    return %c0_i32, %c0_i32_0 : i32, i32
  }
  func.func @transform_5(%arg0: i32) -> (i32, i32) {
    %c0_i32 = arith.constant 0 : i32
    %c0_i32_0 = arith.constant 0 : i32
    %c0_i32_1 = arith.constant 0 : i32
    return %c0_i32, %c0_i32_0 : i32, i32
  }
  func.func @transform_6(%arg0: i32) -> (i32, i32) {
    %c0_i32 = arith.constant 0 : i32
    %c0_i32_0 = arith.constant 0 : i32
    %c0_i32_1 = arith.constant 0 : i32
    return %c0_i32, %c0_i32_0 : i32, i32
  }
  func.func @transform_7(%arg0: i32) -> (i32, i32) {
    %c0_i32 = arith.constant 0 : i32
    %c0_i32_0 = arith.constant 0 : i32
    return %arg0, %c0_i32 : i32, i32
  }
}

</mosaic_0001>

<llo_original>
// kernel: tpu_custom_call.1
$region0: #{tpu_custom_call.1}
  #allocation0 [shape = 'u32[]', space=smem, size = 0x4, offset = 0x4, fixed_abs, tag = 'smem constant byte address 0x4 - core index']
  #allocation1 [shape = 'u32[72,128]{1,0:T(1,128)}', space=vmem, size = 0x9000, scoped, tag = 'internal scratch']
  #allocation2 [shape = 'f32[1,1]{1,0:T(1,128)S(1)}', space=vmem, size = 0x200, scoped, tag = 'scoped memory for tpu_custom_call.1']
  %s0 = inlined_call_operand.hbm [shape: f32[16,32], index: 0, kind: input, shape index: {}]
  %s1 = inlined_call_operand.hbm [shape: f32[32,128], index: 1, kind: input, shape index: {}]
  %s2 = inlined_call_operand.vmem [shape: f32[1,128], index: 2, kind: input, shape index: {}]
  %s3 = inlined_call_operand.hbm [shape: f32[128,128], index: 3, kind: input, shape index: {}]
  %s4 = inlined_call_operand.vmem [shape: f32[1,128], index: 4, kind: input, shape index: {}]
  %s5 = inlined_call_operand.vmem [shape: f32[1,128], index: 5, kind: input, shape index: {}]
  %s6 = inlined_call_operand.<no memory space> [shape: f32[1,1], index: 6, kind: input, shape index: {}]
  %s7 = inlined_call_operand.vmem [shape: f32[16,1], index: 7, kind: output, shape index: {}]
  %s8 = sld [smem:[#allocation0]]
  $region50: #{tpu_custom_call.1} parent=0
    _
  %s10 = ssub.s32 1, %s8
  %s11 = scalar_select 0, %s10, %s8
  %v12 = vstv %s6
  %13 = vst [vmem:[#allocation2] sm:$0x1] %v12
  $region1: #{tpu_custom_call.1} parent=0
    #allocation3 [shape = 'u8[8192]{0}', space=vmem, size = 0x2000, scoped, tag = 'input window, operand 0, single buffered']
    #allocation4 [shape = 's32[1]{0}', space=sflag, size = 0x4, scoped, tag = 'scoped memory for tpu_custom_call.1']
    #allocation5 [shape = 'u8[16384]{0}', space=vmem, size = 0x4000, scoped, tag = 'input window, operand 1, single buffered']
    #allocation6 [shape = 's32[1]{0}', space=sflag, size = 0x4, scoped, tag = 'scoped memory for tpu_custom_call.1']
    #allocation7 [shape = 'u8[65536]{0}', space=vmem, size = 0x10000, scoped, tag = 'input window, operand 3, single buffered']
    %14 = vsyncpa [#allocation4], 0
    %15 = vsyncpa [#allocation6], 0
    // Predicated region
    $region2: #{tpu_custom_call.1} parent=1 // pred_check
      _
    $region3: #{tpu_custom_call.1} parent=1 // pred_check_branch
      %17 = sbr.rel (0) target = $region5
    $region4: #{tpu_custom_call.1} parent=1 // pred_region
      %19 = vsyncadd [#allocation4], 0
      %s20 = sshll.u32 %s0, 4
      %s21 = int_to_ptr.hbm [resolvable:$true] %s20
      %s22 = sshll.u32 [#allocation3], 4
      %s23 = int_to_ptr.vmem [resolvable:$true] %s22
      %28 = dma.hbm_to_vmem [thread:$0]  %s21, 256, %s23, [#allocation4], 128, 128, 8
    $region5: #{tpu_custom_call.1} parent=1 // pred_fallthru
      _
    // Predicated region
    $region6: #{tpu_custom_call.1} parent=1 // pred_check
      _
    $region7: #{tpu_custom_call.1} parent=1 // pred_check_branch
      %30 = sbr.rel (0) target = $region9
    $region8: #{tpu_custom_call.1} parent=1 // pred_region
      %32 = vsyncadd [#allocation6], 0
      %s33 = sshll.u32 %s1, 4
      %s34 = int_to_ptr.hbm [resolvable:$true] %s33
      %s35 = sshll.u32 [#allocation5], 4
      %s36 = int_to_ptr.vmem [resolvable:$true] %s35
      %41 = dma.hbm_to_vmem [thread:$0]  %s34, 512, %s36, [#allocation6], 128, 128, 8
    $region9: #{tpu_custom_call.1} parent=1 // pred_fallthru
      _
    // Predicated region
    $region10: #{tpu_custom_call.1} parent=1 // pred_check
      _
    $region11: #{tpu_custom_call.1} parent=1 // pred_check_branch
      %43 = sbr.rel (0) target = $region13
    $region12: #{tpu_custom_call.1} parent=1 // pred_region
      _
    $region13: #{tpu_custom_call.1} parent=1 // pred_fallthru
      _
    // Predicated region
    $region14: #{tpu_custom_call.1} parent=1 // pred_check
      _
    $region15: #{tpu_custom_call.1} parent=1 // pred_check_branch
      %45 = sbr.rel (0) target = $region17
    $region16: #{tpu_custom_call.1} parent=1 // pred_region
      %47 = vsyncadd [#allocation6], 0
      %s48 = sshll.u32 %s3, 4
      %s49 = int_to_ptr.hbm [resolvable:$true] %s48
      %s50 = sshll.u32 [#allocation7], 4
      %s51 = int_to_ptr.vmem [resolvable:$true] %s50
      %56 = dma.hbm_to_vmem [thread:$0]  %s49, 2048, %s51, [#allocation6], 128, 128, 8
    $region17: #{tpu_custom_call.1} parent=1 // pred_fallthru
      _
    // Predicated region
    $region18: #{tpu_custom_call.1} parent=1 // pred_check
      _
    $region19: #{tpu_custom_call.1} parent=1 // pred_check_branch
      %58 = sbr.rel (0) target = $region21
    $region20: #{tpu_custom_call.1} parent=1 // pred_region
      _
    $region21: #{tpu_custom_call.1} parent=1 // pred_fallthru
      _
    // Predicated region
    $region22: #{tpu_custom_call.1} parent=1 // pred_check
      _
    $region23: #{tpu_custom_call.1} parent=1 // pred_check_branch
      %60 = sbr.rel (0) target = $region25
    $region24: #{tpu_custom_call.1} parent=1 // pred_region
      _
    $region25: #{tpu_custom_call.1} parent=1 // pred_fallthru
      _
    // Predicated region
    $region26: #{tpu_custom_call.1} parent=1 // pred_check
      _
    $region27: #{tpu_custom_call.1} parent=1 // pred_check_branch
      %62 = sbr.rel (0) target = $region29
    $region28: #{tpu_custom_call.1} parent=1 // pred_region
      _
    $region29: #{tpu_custom_call.1} parent=1 // pred_fallthru
      _
    // Predicated region
    $region30: #{tpu_custom_call.1} parent=1 // pred_check
      _
    $region31: #{tpu_custom_call.1} parent=1 // pred_check_branch
      %64 = sbr.rel (0) target = $region33
    $region32: #{tpu_custom_call.1} parent=1 // pred_region
      %66 = dma.done [#allocation4], 256
    $region33: #{tpu_custom_call.1} parent=1 // pred_fallthru
      _
    // Predicated region
    $region34: #{tpu_custom_call.1} parent=1 // pred_check
      _
    $region35: #{tpu_custom_call.1} parent=1 // pred_check_branch
      %68 = sbr.rel (0) target = $region37
    $region36: #{tpu_custom_call.1} parent=1 // pred_region
      %70 = dma.done [#allocation6], 512
    $region37: #{tpu_custom_call.1} parent=1 // pred_fallthru
      _
    // Predicated region
    $region38: #{tpu_custom_call.1} parent=1 // pred_check
      _
    $region39: #{tpu_custom_call.1} parent=1 // pred_check_branch
      %72 = sbr.rel (0) target = $region41
    $region40: #{tpu_custom_call.1} parent=1 // pred_region
      %74 = dma.done [#allocation6], 2048
    $region41: #{tpu_custom_call.1} parent=1 // pred_fallthru
      _
    %v75 = vld [vmem:[#allocation3] sm:$0xff]
    %v76 = vld [vmem:[#allocation3 + $0x8] sm:$0xff]
    %v77 = vld [vmem:[#allocation5] sm:$0xff]
    %v78 = vld [vmem:[#allocation5 + $0x8] sm:$0xff]
    %v79 = vld [vmem:[#allocation5 + $0x10] sm:$0xff]
    %v80 = vld [vmem:[#allocation5 + $0x18] sm:$0xff]
    %v81 = vld [vmem:[%s2] sm:$0x1]
    %v83 = vperm.slane %v81, 0
    %vm85 = vcmask 261120
    %v87 = vsel %vm85, %v75, 0
    %v90 = vsel %vm85, %v76, 0
    %92 = vmatpush.msra.mxu0 0.0
    %93 = vmatpush.msra.mxu0 0.0
    %94 = vmatpush.msra.mxu0 0.0
    %95 = vmatpush.msra.mxu0 0.0
    %96 = vmatpush.msra.mxu0 0.0
    %97 = vmatpush.msra.mxu0 0.0
    %98 = vmatpush.msra.mxu0 0.0
    %99 = vmatpush.msra.mxu0 0.0
    %100 = vmatpush.msra.mxu0 0.0
    %101 = vmatpush.msra.mxu0 0.0
    %102 = vmatpush.msra.mxu0 0.0
    %103 = vmatpush.msra.mxu0 0.0
    %104 = vmatpush.msra.mxu0 %v80
    %105 = vmatpush.msra.mxu0 %v79
    %106 = vmatpush.msra.mxu0 %v78
    %107 = vmatpush.msra.mxu0 %v77
    %108 = vmatmul.f32.gmra.mxu0 %v87
    %v109 = vpop.f32.mrf.mxu0
    %v110 = vadd.f32 %v83, %v109
    %111 = vmatmul.f32.gmra.mxu0 %v90
    %v112 = vpop.f32.mrf.mxu0
    %v113 = vadd.f32 %v83, %v112
    %114 = vdwg.mxu0
    %v115 = vtanh.pop %v110
    %v116 = vtanh.pop %v113
    %v117 = vld [vmem:[#allocation7] sm:$0xff]
    %v118 = vld [vmem:[#allocation7 + $0x8] sm:$0xff]
    %v119 = vld [vmem:[#allocation7 + $0x10] sm:$0xff]
    %v120 = vld [vmem:[#allocation7 + $0x18] sm:$0xff]
    %v121 = vld [vmem:[#allocation7 + $0x20] sm:$0xff]
    %v122 = vld [vmem:[#allocation7 + $0x28] sm:$0xff]
    %v123 = vld [vmem:[#allocation7 + $0x30] sm:$0xff]
    %v124 = vld [vmem:[#allocation7 + $0x38] sm:$0xff]
    %v125 = vld [vmem:[#allocation7 + $0x40] sm:$0xff]
    %v126 = vld [vmem:[#allocation7 + $0x48] sm:$0xff]
    %v127 = vld [vmem:[#allocation7 + $0x50] sm:$0xff]
    %v128 = vld [vmem:[#allocation7 + $0x58] sm:$0xff]
    %v129 = vld [vmem:[#allocation7 + $0x60] sm:$0xff]
    %v130 = vld [vmem:[#allocation7 + $0x68] sm:$0xff]
    %v131 = vld [vmem:[#allocation7 + $0x70] sm:$0xff]
    %v132 = vld [vmem:[#allocation7 + $0x78] sm:$0xff]
    %v133 = vld [vmem:[%s4] sm:$0x1]
    %v135 = vperm.slane %v133, 0
    %137 = vmatpush.msra.mxu0 %v132
    %138 = vmatpush.msra.mxu0 %v131
    %139 = vmatpush.msra.mxu0 %v130
    %140 = vmatpush.msra.mxu0 %v129
    %141 = vmatpush.msra.mxu0 %v128
    %142 = vmatpush.msra.mxu0 %v127
    %143 = vmatpush.msra.mxu0 %v126
    %144 = vmatpush.msra.mxu0 %v125
    %145 = vmatpush.msra.mxu0 %v124
    %146 = vmatpush.msra.mxu0 %v123
    %147 = vmatpush.msra.mxu0 %v122
    %148 = vmatpush.msra.mxu0 %v121
    %149 = vmatpush.msra.mxu0 %v120
    %150 = vmatpush.msra.mxu0 %v119
    %151 = vmatpush.msra.mxu0 %v118
    %152 = vmatpush.msra.mxu0 %v117
    %153 = vmatmul.f32.gmra.mxu0 %v115
    %v154 = vpop.f32.mrf.mxu0
    %v155 = vadd.f32 %v135, %v154
    %156 = vmatmul.f32.gmra.mxu0 %v116
    %v157 = vpop.f32.mrf.mxu0
    %v158 = vadd.f32 %v135, %v157
    %159 = vdwg.mxu0
    %v160 = vtanh.pop %v155
    %v161 = vtanh.pop %v158
    %v162 = vld [vmem:[%s5] sm:$0x1]
    %v164 = vperm.slane %v162, 0
    %v166 = vmul.f32 %v160, %v164
    %v167 = vmul.f32 %v161, %v164
    %168 = vadd.xlane.f32.xlu0 %v166
    %v169 = vpop.xlane.xlu0 %168
    %170 = vadd.xlane.f32.xlu0 %v167
    %v171 = vpop.xlane.xlu0 %170
    %v172 = vld [vmem:[#allocation2] sm:$0x1]
    %v174 = vperm.slane %v172, 0
    %v176 = vadd.f32 %v169, %v174
    %v177 = vadd.f32 %v171, %v174
    %v178 = vxor.u32 %v176, 2147483648
    %v179 = vxor.u32 %v177, 2147483648
    %v180 = vmul.f32 %v178, 1.442695
    %v181 = vpow.pop %v180
    %v182 = vmul.f32 %v179, 1.442695
    %v183 = vpow.pop %v182
    %v184 = vadd.f32 %v181, 1.0
    %v185 = vadd.f32 %v183, 1.0
    %v186 = vrcp.pop %v184
    %v187 = vmul.f32 %v184, %v186
    %v188 = vsub.f32 1.0, %v187
    %v189 = vmul.f32 %v186, %v188
    %v190 = vadd.f32 %v186, %v189
    %vm191 = vweird.f32 %v184
    %vm192 = vweird.f32 %v186
    %vm193 = vmor %vm191, %vm192
    %v194 = vsel %vm193, %v186, %v190
    %v195 = vand.u32 2147483647, %v184
    %vm196 = vcmp.eq.f32.partialorder %v195, 8.507059e+37
    %v197 = vand.u32 %v184, 2147483648
    %v198 = vor.u32 1.1754944e-38, %v197
    %v199 = vsel %vm196, %v198, %v194
    %v200 = vmul.f32 1.0, %v199
    %v201 = vrcp.pop %v185
    %v202 = vmul.f32 %v185, %v201
    %v203 = vsub.f32 1.0, %v202
    %v204 = vmul.f32 %v201, %v203
    %v205 = vadd.f32 %v201, %v204
    %vm206 = vweird.f32 %v185
    %vm207 = vweird.f32 %v201
    %vm208 = vmor %vm206, %vm207
    %v209 = vsel %vm208, %v201, %v205
    %v210 = vand.u32 2147483647, %v185
    %vm211 = vcmp.eq.f32.partialorder %v210, 8.507059e+37
    %v212 = vand.u32 %v185, 2147483648
    %v213 = vor.u32 1.1754944e-38, %v212
    %v214 = vsel %vm211, %v213, %v209
    %v215 = vmul.f32 1.0, %v214
    %vm216 = vcmask 7168
    %217 = vst.msk [vmem:[%s7] sm:$0xff] %vm216, %v200
    %218 = vst.msk [vmem:[%s7 + $0x8] sm:$0xff] %vm216, %v215
    // Predicated region
    $region42: #{tpu_custom_call.1} parent=1 // pred_check
      _
    $region43: #{tpu_custom_call.1} parent=1 // pred_check_branch
      %220 = sbr.rel (0) target = $region45
    $region44: #{tpu_custom_call.1} parent=1 // pred_region
      _
    $region45: #{tpu_custom_call.1} parent=1 // pred_fallthru
      _
    // Predicated region
    $region46: #{tpu_custom_call.1} parent=1 // pred_check
      _
    $region47: #{tpu_custom_call.1} parent=1 // pred_check_branch
      %222 = sbr.rel (0) target = $region49
    $region48: #{tpu_custom_call.1} parent=1 // pred_region
      _
    $region49: #{tpu_custom_call.1} parent=1 // pred_fallthru
      _
    %223 = vsyncpa [#allocation4], 1
    %224 = vsyncpa [#allocation6], 1

</llo_original>
